<compile_context>
chip_gen: v7x
topology: tpu7x:2x2x1
jax: 0.10.0
libtpu: 0.0.40
codegen_flags: <defaults>
</compile_context>

<pallas_src>
import jax
import jax.numpy as jnp
from jax.experimental import pallas as pl
from jax.experimental.pallas import tpu as pltpu


def _patch_embed_kernel(x_ref, w_ref, b_ref, pos_ref, cls_ref, out_ref):
    # x_ref:   (block_b, C, n_patches, patch_size)  raw NCHW-derived layout (pure reshape)
    # w_ref:   (C, patch_size, emb)                 Linear weight, rows permuted to [c, s2]
    # b_ref:   (1, emb)                             Linear bias
    # pos_ref: (n_patches, emb)                     pos_emb[1:]  (patch rows only)
    # cls_ref: (1, emb)                             cls_token + pos_emb[0] (batch-invariant)
    # out_ref: (block_b, n_patches + 1, emb)        full token slab incl. cls row
    bb, C, N, S = x_ref.shape
    E = out_ref.shape[-1]

    # Accumulate straight from the first channel's MXU matmul (no zeros init,
    # no full-block materialization -> lower vreg pressure at large tiles).
    x0 = x_ref[:, 0:1, :, :].reshape(bb * N, S)
    acc = jnp.dot(x0, w_ref[0], preferred_element_type=jnp.float32)
    for c in range(1, C):  # static unroll; C is a small compile-time constant
        xc = x_ref[:, c:c + 1, :, :].reshape(bb * N, S)
        acc = acc + jnp.dot(xc, w_ref[c], preferred_element_type=jnp.float32)

    # Linear bias + Tanh, then + pos_emb[1:]  (pos is added AFTER tanh, as in
    # the module's forward).  EUP tanh is free filler while HBM-bound; on v7x
    # it could become the binding slot for very large emb (see review note).
    act = jnp.tanh(acc + b_ref[...])
    act = act.reshape(bb, N, E) + pos_ref[...][None, :, :]

    # Fused cls row: write row 0 (broadcast cls+pos[0]) and rows 1..N in-kernel.
    # The sublane-offset store is far cheaper than an extra HBM concatenate pass.
    out_ref[:, 0:1, :] = jnp.broadcast_to(
        cls_ref[...][None, :, :], (bb, 1, E)).astype(out_ref.dtype)
    out_ref[:, 1:, :] = act.astype(out_ref.dtype)


def _round_up(v, m):
    return ((v + m - 1) // m) * m


def _pick_block_b(B, n_patches, C, S, E,
                  *, vmem_budget_bytes=8 << 20, max_tokens=8192):
    """Largest batch tile (divisor of B) whose double-buffered in+out VMEM
    footprint (including (8,128) lane/sublane padding) fits the budget.
    Prefers grid length >= 2 so the 'parallel' batch axis can shard across
    the two v7x TensorCores."""
    def step_bytes(bb):
        in_b = bb * C * _round_up(n_patches, 8) * _round_up(S, 128) * 4
        out_b = bb * _round_up(n_patches + 1, 8) * _round_up(E, 128) * 4
        return 2 * (in_b + out_b)          # x2: double-buffered pipeline

    divisors = [d for d in range(1, B + 1) if B % d == 0]
    fits = [d for d in divisors
            if step_bytes(d) <= vmem_budget_bytes and d * n_patches <= max_tokens]
    if not fits:
        fits = [1]
    multi_step = [d for d in fits if B // d >= 2]
    return max(multi_step) if multi_step else max(fits)


def patch_embedding_linear(x, w, b, cls_token, pos_emb, *, patch_size):
    """x: (B, C, H, W_full) NCHW float32.

    w is the transposed nn.Linear weight, shape (patch_size*C, emb), rows
    ordered as the einops feature order (s1 s2 c) = [s2, c].
    Returns (B, H*(W_full//patch_size) + 1, emb).
    """
    B, C, H, Wf = x.shape
    assert Wf % patch_size == 0
    nw = Wf // patch_size
    n_patches = H * nw
    S = patch_size
    emb = w.shape[1]
    assert w.shape[0] == S * C
    assert pos_emb.shape[0] == n_patches + 1

    # Pure reshape (no HBM copy): NCHW -> (B, C, n_patches, patch_size).
    # Token order is (h, w), exactly the einops rearrange with s1=1.
    x4 = x.reshape(B, C, n_patches, S)

    # Absorb the (s2, c) feature interleave into the weight (one-time, tiny):
    # Linear weight row index = s2*C + c  ->  w_perm[c, s2, :].
    w_perm = w.reshape(S, C, emb).transpose(1, 0, 2)          # (C, S, emb)

    bias2d = b.reshape(1, emb)
    pos_patch = pos_emb[1:]                                   # (n_patches, emb)
    cls_row = cls_token.reshape(1, emb) + pos_emb[0:1]        # (1, emb), batch-invariant

    block_b = _pick_block_b(B, n_patches, C, S, emb)
    grid = (B // block_b,)

    return pl.pallas_call(
        _patch_embed_kernel,
        out_shape=jax.ShapeDtypeStruct((B, n_patches + 1, emb), jnp.float32),
        grid_spec=pltpu.PrefetchScalarGridSpec(
            num_scalar_prefetch=0,
            grid=grid,
            in_specs=[
                pl.BlockSpec((block_b, C, n_patches, S), lambda i: (i, 0, 0, 0)),
                # Invariant operands: constant index_map -> held resident in VMEM.
                pl.BlockSpec((C, S, emb), lambda i: (0, 0, 0)),
                pl.BlockSpec((1, emb), lambda i: (0, 0)),
                pl.BlockSpec((n_patches, emb), lambda i: (0, 0)),
                pl.BlockSpec((1, emb), lambda i: (0, 0)),
            ],
            out_specs=pl.BlockSpec((block_b, n_patches + 1, emb),
                                   lambda i: (i, 0, 0)),
        ),
        compiler_params=pltpu.CompilerParams(
            dimension_semantics=("parallel",),
            vmem_limit_bytes=32 * 1024 * 1024),
    )(x4, w_perm, bias2d, pos_patch, cls_row)


def _reference(x, w, b, cls_token, pos_emb, *, patch_size):
    B, C, H, Wf = x.shape
    nw = Wf // patch_size
    xr = x.reshape(B, C, H, nw, patch_size)
    patches = jnp.transpose(xr, (0, 2, 3, 4, 1)).reshape(B, H * nw, patch_size * C)
    proj = jnp.tanh(
        jnp.einsum('bnk,ke->bne', patches, w,
                   precision=jax.lax.Precision.HIGHEST) + b[None, None, :])
    cls = jnp.broadcast_to(cls_token.reshape(1, 1, -1), (B, 1, w.shape[1]))
    out = jnp.concatenate([cls, proj], axis=1)
    return out + pos_emb[None]


if __name__ == "__main__":
    def run_case(key, B, C, H, Wf, patch_size, emb_size):
        nw = Wf // patch_size
        n_patches = H * nw
        patch_dim = patch_size * C
        kx, kw, kb, kc, kp = jax.random.split(key, 5)
        x = jax.random.normal(kx, (B, C, H, Wf), dtype=jnp.float32)
        # nn.Linear(patch_dim, emb): weight (emb, patch_dim); kernel takes its transpose.
        w_linear = jax.random.normal(kw, (emb_size, patch_dim), dtype=jnp.float32) * 0.1
        b_linear = jax.random.normal(kb, (emb_size,), dtype=jnp.float32) * 0.1
        cls_token = jax.random.normal(kc, (1, 1, emb_size), dtype=jnp.float32)
        pos_emb = jax.random.normal(kp, (n_patches + 1, emb_size), dtype=jnp.float32)

        out = patch_embedding_linear(
            x, w_linear.T, b_linear, cls_token, pos_emb, patch_size=patch_size)
        out = jax.block_until_ready(out)

        ref = _reference(x, w_linear.T, b_linear, cls_token, pos_emb,
                         patch_size=patch_size)
        assert out.shape == (B, n_patches + 1, emb_size)
        assert jnp.allclose(out, ref, atol=5e-4, rtol=5e-4)

    key = jax.random.PRNGKey(0)
    k1, k2 = jax.random.split(key)
    # Default module usage: single-channel time series (H=1, W=seq_len).
    run_case(k1, B=2, C=1, H=1, Wf=64, patch_size=8, emb_size=32)
    # Multi-channel / H>1 case: exercises the weight-permutation path (no x transpose).
    run_case(k2, B=2, C=3, H=2, Wf=32, patch_size=8, emb_size=32)
    print("KERNEL_OK")
</pallas_src>

<mosaic_0001>
module attributes {stable_mosaic.version = 11 : i64} {
  func.func @_patch_embed_kernel(%arg0: i32, %arg1: memref<1x1x8x8xf32, #tpu.memory_space<vmem>>, %arg2: memref<1x8x32xf32, #tpu.memory_space<vmem>>, %arg3: memref<1x32xf32, #tpu.memory_space<vmem>>, %arg4: memref<8x32xf32, #tpu.memory_space<vmem>>, %arg5: memref<1x32xf32, #tpu.memory_space<vmem>>, %arg6: memref<1x9x32xf32, #tpu.memory_space<vmem>>) attributes {dimension_semantics = [#tpu.dimension_semantics<parallel>], iteration_bounds = array<i64: 2>, scalar_prefetch = 0 : i64, scratch_operands = 0 : i64, tpu.core_type = #tpu.core_type<tc>, window_params = [{transform_indices = @transform_0, window_bounds = array<i64: 1, 1, 8, 8>}, {pipeline_mode = #tpu.pipeline_mode<synchronous>, transform_indices = @transform_1, window_bounds = array<i64: 1, 8, 32>}, {pipeline_mode = #tpu.pipeline_mode<synchronous>, transform_indices = @transform_2, window_bounds = array<i64: 1, 32>}, {pipeline_mode = #tpu.pipeline_mode<synchronous>, transform_indices = @transform_3, window_bounds = array<i64: 8, 32>}, {pipeline_mode = #tpu.pipeline_mode<synchronous>, transform_indices = @transform_4, window_bounds = array<i64: 1, 32>}, {transform_indices = @transform_5, window_bounds = array<i64: 1, 9, 32>}]} {
    %c0 = arith.constant 0 : index
    %c0_0 = arith.constant 0 : index
    %c0_1 = arith.constant 0 : index
    %c0_2 = arith.constant 0 : index
    %0 = vector.load %arg1[%c0, %c0_0, %c0_1, %c0_2] : memref<1x1x8x8xf32, #tpu.memory_space<vmem>>, vector<1x1x8x8xf32>
    %1 = vector.shape_cast %0 : vector<1x1x8x8xf32> to vector<8x8xf32>
    %c0_3 = arith.constant 0 : index
    %c0_4 = arith.constant 0 : index
    %c0_5 = arith.constant 0 : index
    %2 = vector.load %arg2[%c0_3, %c0_4, %c0_5] : memref<1x8x32xf32, #tpu.memory_space<vmem>>, vector<1x8x32xf32>
    %3 = vector.shape_cast %2 : vector<1x8x32xf32> to vector<8x32xf32>
    %cst = arith.constant dense<0.000000e+00> : vector<8x32xf32>
    %4 = tpu.matmul %1, %3, %cst {dimension_numbers = #tpu.dot_dimension_numbers<[1], [0], [0], [1], [0, 0, 1, 1], [], []>} : vector<8x8xf32>, vector<8x32xf32>, vector<8x32xf32> -> vector<8x32xf32>
    %c0_6 = arith.constant 0 : index
    %c0_7 = arith.constant 0 : index
    %5 = vector.load %arg3[%c0_6, %c0_7] : memref<1x32xf32, #tpu.memory_space<vmem>>, vector<1x32xf32>
    %6 = vector.broadcast %5 : vector<1x32xf32> to vector<8x32xf32>
    %7 = arith.addf %4, %6 : vector<8x32xf32>
    %8 = math.tanh %7 : vector<8x32xf32>
    %9 = vector.shape_cast %8 : vector<8x32xf32> to vector<1x8x32xf32>
    %c0_8 = arith.constant 0 : index
    %c0_9 = arith.constant 0 : index
    %10 = vector.load %arg4[%c0_8, %c0_9] : memref<8x32xf32, #tpu.memory_space<vmem>>, vector<8x32xf32>
    %11 = vector.shape_cast %10 : vector<8x32xf32> to vector<1x8x32xf32>
    %12 = arith.addf %9, %11 : vector<1x8x32xf32>
    %c0_10 = arith.constant 0 : index
    %c0_11 = arith.constant 0 : index
    %13 = vector.load %arg5[%c0_10, %c0_11] : memref<1x32xf32, #tpu.memory_space<vmem>>, vector<1x32xf32>
    %14 = vector.shape_cast %13 : vector<1x32xf32> to vector<1x1x32xf32>
    %c0_12 = arith.constant 0 : index
    %c0_13 = arith.constant 0 : index
    %c0_14 = arith.constant 0 : index
    %15 = vector.load %arg6[%c0_12, %c0_13, %c0_14] : memref<1x9x32xf32, #tpu.memory_space<vmem>>, vector<1x1x32xf32>
    tpu.vector_store %arg6[%c0_12, %c0_13, %c0_14], %14 {strides = array<i32>} : memref<1x9x32xf32, #tpu.memory_space<vmem>>, vector<1x1x32xf32>,
    %c0_15 = arith.constant 0 : index
    %c1 = arith.constant 1 : index
    %c0_16 = arith.constant 0 : index
    %16 = vector.load %arg6[%c0_15, %c1, %c0_16] : memref<1x9x32xf32, #tpu.memory_space<vmem>>, vector<1x8x32xf32>
    tpu.vector_store %arg6[%c0_15, %c1, %c0_16], %12 {strides = array<i32>} : memref<1x9x32xf32, #tpu.memory_space<vmem>>, vector<1x8x32xf32>,
    return
  }
  func.func @transform_0(%arg0: i32) -> (i32, i32, i32, i32) {
    %c0_i32 = arith.constant 0 : i32
    %c0_i32_0 = arith.constant 0 : i32
    %c0_i32_1 = arith.constant 0 : i32
    %c0_i32_2 = arith.constant 0 : i32
    return %arg0, %c0_i32, %c0_i32_0, %c0_i32_1 : i32, i32, i32, i32
  }
  func.func @transform_1(%arg0: i32) -> (i32, i32, i32) {
    %c0_i32 = arith.constant 0 : i32
    %c0_i32_0 = arith.constant 0 : i32
    %c0_i32_1 = arith.constant 0 : i32
    %c0_i32_2 = arith.constant 0 : i32
    return %c0_i32, %c0_i32_0, %c0_i32_1 : i32, i32, i32
  }
  func.func @transform_2(%arg0: i32) -> (i32, i32) {
    %c0_i32 = arith.constant 0 : i32
    %c0_i32_0 = arith.constant 0 : i32
    %c0_i32_1 = arith.constant 0 : i32
    return %c0_i32, %c0_i32_0 : i32, i32
  }
  func.func @transform_3(%arg0: i32) -> (i32, i32) {
    %c0_i32 = arith.constant 0 : i32
    %c0_i32_0 = arith.constant 0 : i32
    %c0_i32_1 = arith.constant 0 : i32
    return %c0_i32, %c0_i32_0 : i32, i32
  }
  func.func @transform_4(%arg0: i32) -> (i32, i32) {
    %c0_i32 = arith.constant 0 : i32
    %c0_i32_0 = arith.constant 0 : i32
    %c0_i32_1 = arith.constant 0 : i32
    return %c0_i32, %c0_i32_0 : i32, i32
  }
  func.func @transform_5(%arg0: i32) -> (i32, i32, i32) {
    %c0_i32 = arith.constant 0 : i32
    %c0_i32_0 = arith.constant 0 : i32
    %c0_i32_1 = arith.constant 0 : i32
    return %arg0, %c0_i32, %c0_i32_0 : i32, i32, i32
  }
}

</mosaic_0001>

<llo_original>
// kernel: tpu_custom_call.1
$region0: #{tpu_custom_call.1}
  #allocation0 [shape = 'u32[]', space=smem, size = 0x4, offset = 0x4, fixed_abs, tag = 'smem constant byte address 0x4 - core index']
  #allocation1 [shape = 'u32[144,128]{1,0:T(1,128)}', space=vmem, size = 0x12000, scoped, tag = 'internal scratch']
  %s0 = inlined_call_operand.hbm [shape: f32[2,1,8,8], index: 0, kind: input, shape index: {}]
  %s1 = inlined_call_operand.hbm [shape: f32[1,8,32], index: 1, kind: input, shape index: {}]
  %s2 = inlined_call_operand.vmem [shape: f32[1,32], index: 2, kind: input, shape index: {}]
  %s3 = inlined_call_operand.vmem [shape: f32[8,32], index: 3, kind: input, shape index: {}]
  %s4 = inlined_call_operand.vmem [shape: f32[1,32], index: 4, kind: input, shape index: {}]
  %s5 = inlined_call_operand.vmem [shape: f32[2,9,32], index: 5, kind: output, shape index: {}]
  %s6 = sld [smem:[#allocation0]]
  $region61: #{tpu_custom_call.1} parent=0
    _
  %s8 = ssub.s32 1, %s6
  %s9 = scalar_select 0, %s8, %s6
  $region1: #{tpu_custom_call.1} parent=0
    #allocation2 [shape = 'u8[8192]{0}', space=vmem, size = 0x2000, scoped, tag = 'input window, operand 0']
    #allocation3 [shape = 's32[2]{0}', space=sflag, size = 0x8, scoped, tag = 'scoped memory for tpu_custom_call.1']
    #allocation4 [shape = 'u8[4096]{0}', space=vmem, size = 0x1000, scoped, tag = 'input window, operand 1, single buffered']
    #allocation5 [shape = 's32[1]{0}', space=sflag, size = 0x4, scoped, tag = 'scoped memory for tpu_custom_call.1']
    %10 = vsyncpa [#allocation3], 0
    %s11 = scalar_lea.sflag [#allocation3], 1
    %12 = vsyncpa %s11, 0
    %13 = vsyncpa [#allocation5], 0
    loop: start=0, step=1, limit=4
    $region2: #{tpu_custom_call.1} parent=1 // loop_pre_header
      _
    $region3: #{tpu_custom_call.1} parent=1 // loop_header
      %s15 = sphi 0, %s19
      %p16 = scmp.ge.s32.totalorder %s15, 4
      %s25 = sphi 0, %s27
      %s28 = sphi 0, %s25
      %s29 = sphi 0, %s28
      %s45 = sphi 0, %s29
      %s49 = sphi 0, %s49
      %s51 = sphi 0, %s49
      %s52 = sphi 0, %s51
      %s66 = sphi 0, %s52
      %s70 = sphi 0, %s70
      %s72 = sphi 0, %s70
      %s73 = sphi 0, %s72
      %s87 = sphi 0, %s73
      %s91 = sphi 0, %s91
      %s93 = sphi 0, %s91
      %s94 = sphi 0, %s93
      %s108 = sphi 0, %s94
      %s112 = sphi 0, %s112
      %s114 = sphi 0, %s112
      %s115 = sphi 0, %s114
      %s129 = sphi 0, %s115
      %s135 = sphi 0, %s137
      %s138 = sphi 0, %s135
      %s139 = sphi 0, %s138
      %s155 = sphi 0, %s139
    $region4: #{tpu_custom_call.1} parent=1 // loop_header_branch
      %18 = sbr.rel (%p16) target = $region8
    $region5: #{tpu_custom_call.1} parent=1 // loop_body
      %s20 = ssub.s32 %s15, 1
      %s21 = ssub.s32 %s15, 2
      %s22 = sadd.s32 %s15, 1
      %s23 = ssub.s32 %s15, %s22
      %p24 = scmp.eq.s32.totalorder %s23, 0
      %s26 = sadd.s32 %s25, 1
      %s27 = scalar_select %p24, %s25, %s26
      %p30 = pneg %p24
      %p31 = scmp.eq.s32.totalorder %s15, 1
      %p32 = por %p30, %p31
      %p33 = scmp.ne.s32.totalorder %s25, %s28
      %p34 = scmp.eq.s32.totalorder %s15, 0
      %p35 = por %p33, %p34
      %p36 = scmp.ne.s32.totalorder %s25, %s28
      %p37 = scmp.eq.s32.totalorder %s20, 1
      %p38 = por %p36, %p37
      %p39 = scmp.ne.s32.totalorder %s28, %s29
      %p40 = scmp.eq.s32.totalorder %s20, 0
      %p41 = por %p39, %p40
      %p42 = scmp.ne.s32.totalorder %s28, %s29
      %p43 = scmp.eq.s32.totalorder %s21, 1
      %p44 = por %p42, %p43
      %p46 = scmp.ne.s32.totalorder %s29, %s45
      %p47 = scmp.eq.s32.totalorder %s21, 0
      %p48 = por %p46, %p47
      %s50 = sadd.s32 %s49, 1
      %p53 = scmp.eq.s32.totalorder %s15, 1
      %p54 = scmp.ne.s32.totalorder %s49, %s51
      %p55 = scmp.eq.s32.totalorder %s15, 0
      %p56 = por %p54, %p55
      %p57 = scmp.ne.s32.totalorder %s49, %s51
      %p58 = scmp.eq.s32.totalorder %s20, 1
      %p59 = por %p57, %p58
      %p60 = scmp.ne.s32.totalorder %s51, %s52
      %p61 = scmp.eq.s32.totalorder %s20, 0
      %p62 = por %p60, %p61
      %p63 = scmp.ne.s32.totalorder %s51, %s52
      %p64 = scmp.eq.s32.totalorder %s21, 1
      %p65 = por %p63, %p64
      %p67 = scmp.ne.s32.totalorder %s52, %s66
      %p68 = scmp.eq.s32.totalorder %s21, 0
      %p69 = por %p67, %p68
      %s71 = sadd.s32 %s70, 1
      %p74 = scmp.eq.s32.totalorder %s15, 1
      %p75 = scmp.ne.s32.totalorder %s70, %s72
      %p76 = scmp.eq.s32.totalorder %s15, 0
      %p77 = por %p75, %p76
      %p78 = scmp.ne.s32.totalorder %s70, %s72
      %p79 = scmp.eq.s32.totalorder %s20, 1
      %p80 = por %p78, %p79
      %p81 = scmp.ne.s32.totalorder %s72, %s73
      %p82 = scmp.eq.s32.totalorder %s20, 0
      %p83 = por %p81, %p82
      %p84 = scmp.ne.s32.totalorder %s72, %s73
      %p85 = scmp.eq.s32.totalorder %s21, 1
      %p86 = por %p84, %p85
      %p88 = scmp.ne.s32.totalorder %s73, %s87
      %p89 = scmp.eq.s32.totalorder %s21, 0
      %p90 = por %p88, %p89
      %s92 = sadd.s32 %s91, 1
      %p95 = scmp.eq.s32.totalorder %s15, 1
      %p96 = scmp.ne.s32.totalorder %s91, %s93
      %p97 = scmp.eq.s32.totalorder %s15, 0
      %p98 = por %p96, %p97
      %p99 = scmp.ne.s32.totalorder %s91, %s93
      %p100 = scmp.eq.s32.totalorder %s20, 1
      %p101 = por %p99, %p100
      %p102 = scmp.ne.s32.totalorder %s93, %s94
      %p103 = scmp.eq.s32.totalorder %s20, 0
      %p104 = por %p102, %p103
      %p105 = scmp.ne.s32.totalorder %s93, %s94
      %p106 = scmp.eq.s32.totalorder %s21, 1
      %p107 = por %p105, %p106
      %p109 = scmp.ne.s32.totalorder %s94, %s108
      %p110 = scmp.eq.s32.totalorder %s21, 0
      %p111 = por %p109, %p110
      %s113 = sadd.s32 %s112, 1
      %p116 = scmp.eq.s32.totalorder %s15, 1
      %p117 = scmp.ne.s32.totalorder %s112, %s114
      %p118 = scmp.eq.s32.totalorder %s15, 0
      %p119 = por %p117, %p118
      %p120 = scmp.ne.s32.totalorder %s112, %s114
      %p121 = scmp.eq.s32.totalorder %s20, 1
      %p122 = por %p120, %p121
      %p123 = scmp.ne.s32.totalorder %s114, %s115
      %p124 = scmp.eq.s32.totalorder %s20, 0
      %p125 = por %p123, %p124
      %p126 = scmp.ne.s32.totalorder %s114, %s115
      %p127 = scmp.eq.s32.totalorder %s21, 1
      %p128 = por %p126, %p127
      %p130 = scmp.ne.s32.totalorder %s115, %s129
      %p131 = scmp.eq.s32.totalorder %s21, 0
      %p132 = por %p130, %p131
      %s133 = ssub.s32 %s15, %s22
      %p134 = scmp.eq.s32.totalorder %s133, 0
      %s136 = sadd.s32 %s135, 1
      %s137 = scalar_select %p134, %s135, %s136
      %p140 = pneg %p134
      %p141 = scmp.eq.s32.totalorder %s15, 1
      %p142 = por %p140, %p141
      %p143 = scmp.ne.s32.totalorder %s135, %s138
      %p144 = scmp.eq.s32.totalorder %s15, 0
      %p145 = por %p143, %p144
      %p146 = scmp.ne.s32.totalorder %s135, %s138
      %p147 = scmp.eq.s32.totalorder %s20, 1
      %p148 = por %p146, %p147
      %p149 = scmp.ne.s32.totalorder %s138, %s139
      %p150 = scmp.eq.s32.totalorder %s20, 0
      %p151 = por %p149, %p150
      %p152 = scmp.ne.s32.totalorder %s138, %s139
      %p153 = scmp.eq.s32.totalorder %s21, 1
      %p154 = por %p152, %p153
      %p156 = scmp.ne.s32.totalorder %s139, %s155
      %p157 = scmp.eq.s32.totalorder %s21, 0
      %p158 = por %p156, %p157
      %p159 = scmp.le.s32.totalorder 1, %s15
      %p160 = scmp.lt.s32.totalorder %s15, 3
      %p161 = pnand %p159, %p160
      %p162 = pneg %p161
      // Predicated region
      $region9: #{tpu_custom_call.1} parent=5 // pred_check
        _
      $region10: #{tpu_custom_call.1} parent=5 // pred_check_branch
        %164 = sbr.rel (%p161) target = $region12
      $region11: #{tpu_custom_call.1} parent=5 // pred_region
        %s165 = ssub.s32 %s15, 1
        // Predicated region
        $region13: #{tpu_custom_call.1} parent=11 // pred_check
          %p166 = pneg %p62
        $region14: #{tpu_custom_call.1} parent=11 // pred_check_branch
          %168 = sbr.rel (%p166) target = $region16
        $region15: #{tpu_custom_call.1} parent=11 // pred_region
          %s170 = ssub.s32 128, 128
          %171 = vsyncadd [#allocation5], %s170
          %s173 = sshll.u32 [#allocation4], 4
          %s174 = int_to_ptr.vmem [resolvable:$true] %s173
          %176 = dma.hbm_to_vmem [thread:$0]  %s1, 128, %s174, [#allocation5]
        $region16: #{tpu_custom_call.1} parent=11 // pred_fallthru
          _
        // Predicated region
        $region17: #{tpu_custom_call.1} parent=11 // pred_check
          %p177 = pneg %p83
        $region18: #{tpu_custom_call.1} parent=11 // pred_check_branch
          %179 = sbr.rel (%p177) target = $region20
        $region19: #{tpu_custom_call.1} parent=11 // pred_region
          _
        $region20: #{tpu_custom_call.1} parent=11 // pred_fallthru
          _
        // Predicated region
        $region21: #{tpu_custom_call.1} parent=11 // pred_check
          %p180 = pneg %p104
        $region22: #{tpu_custom_call.1} parent=11 // pred_check_branch
          %182 = sbr.rel (%p180) target = $region24
        $region23: #{tpu_custom_call.1} parent=11 // pred_region
          _
        $region24: #{tpu_custom_call.1} parent=11 // pred_fallthru
          _
        // Predicated region
        $region25: #{tpu_custom_call.1} parent=11 // pred_check
          %p183 = pneg %p125
        $region26: #{tpu_custom_call.1} parent=11 // pred_check_branch
          %185 = sbr.rel (%p183) target = $region28
        $region27: #{tpu_custom_call.1} parent=11 // pred_region
          _
        $region28: #{tpu_custom_call.1} parent=11 // pred_fallthru
          _
      $region12: #{tpu_custom_call.1} parent=5 // pred_fallthru
        _
      %p186 = scmp.lt.s32.totalorder %s15, 2
      // Predicated region
      $region29: #{tpu_custom_call.1} parent=5 // pred_check
        %p187 = pneg %p186
      $region30: #{tpu_custom_call.1} parent=5 // pred_check_branch
        %189 = sbr.rel (%p187) target = $region32
      $region31: #{tpu_custom_call.1} parent=5 // pred_region
        // Predicated region
        $region33: #{tpu_custom_call.1} parent=31 // pred_check
          %p190 = pneg %p35
        $region34: #{tpu_custom_call.1} parent=31 // pred_check_branch
          %192 = sbr.rel (%p190) target = $region36
        $region35: #{tpu_custom_call.1} parent=31 // pred_region
          %s193 = sand.u32 %s25, 1
          %s194 = scalar_lea.sflag [#allocation3], %s193
          %s195 = sand.u32 %s25, 1
          %s196 = smul.addr %s195, 8
          %s197 = scalar_lea.vmem [#allocation2], %s196
          %s199 = ssub.s32 128, 128
          %200 = vsyncadd %s194, %s199
          %s201 = smul.addr %s15, 128
          %s202 = scalar_lea.hbm %s0, %s201
          %s204 = sshll.u32 %s197, 4
          %s205 = int_to_ptr.vmem [resolvable:$true] %s204
          %207 = dma.hbm_to_vmem [thread:$0]  %s202, 128, %s205, %s194
        $region36: #{tpu_custom_call.1} parent=31 // pred_fallthru
          _
      $region32: #{tpu_custom_call.1} parent=5 // pred_fallthru
        _
      %p208 = scmp.le.s32.totalorder 1, %s15
      %p209 = scmp.lt.s32.totalorder %s15, 3
      %p210 = pnand %p208, %p209
      %p211 = pneg %p210
      // Predicated region
      $region37: #{tpu_custom_call.1} parent=5 // pred_check
        _
      $region38: #{tpu_custom_call.1} parent=5 // pred_check_branch
        %213 = sbr.rel (%p210) target = $region40
      $region39: #{tpu_custom_call.1} parent=5 // pred_region
        %s214 = ssub.s32 %s15, 1
        %s215 = sand.u32 %s28, 1
        %s216 = scalar_lea.sflag [#allocation3], %s215
        %s217 = sand.u32 %s28, 1
        %s218 = smul.addr %s217, 8
        %s219 = scalar_lea.vmem [#allocation2], %s218
        // Predicated region
        $region41: #{tpu_custom_call.1} parent=39 // pred_check
          %p220 = pneg %p41
        $region42: #{tpu_custom_call.1} parent=39 // pred_check_branch
          %222 = sbr.rel (%p220) target = $region44
        $region43: #{tpu_custom_call.1} parent=39 // pred_region
          %223 = dma.done %s216, 128
        $region44: #{tpu_custom_call.1} parent=39 // pred_fallthru
          _
        // Predicated region
        $region45: #{tpu_custom_call.1} parent=39 // pred_check
          %p224 = pneg %p62
        $region46: #{tpu_custom_call.1} parent=39 // pred_check_branch
          %226 = sbr.rel (%p224) target = $region48
        $region47: #{tpu_custom_call.1} parent=39 // pred_region
          %227 = dma.done [#allocation5], 128
        $region48: #{tpu_custom_call.1} parent=39 // pred_fallthru
          _
        %s228 = sand.u32 %s28, 1
        %s229 = scalar_lea.sflag [#allocation3], %s228
        %s230 = sand.u32 %s28, 1
        %s231 = smul.addr %s230, 8
        %s232 = scalar_lea.vmem [#allocation2], %s231
        %p233 = pneg %p41
        %p234 = pneg %p38
        %p235 = pneg %p62
        %p236 = pneg %p59
        %p237 = pneg %p83
        %p238 = pneg %p80
        %p239 = pneg %p104
        %p240 = pneg %p101
        %p241 = pneg %p125
        %p242 = pneg %p122
        %p243 = pneg %p151
        %p244 = pneg %p148
        %p245 = scmp.lt.s32.totalorder %s20, 1
        %s246 = scalar_select %p245, %s20, 1
        %s247 = smul.addr %s246, 2
        %s248 = smul.addr %s247, 8
        %s249 = scalar_lea.vmem %s5, %s248
        %p250 = scmp.lt.s32.totalorder %s20, 1
        %s251 = scalar_select %p250, %s20, 1
        %s252 = smul.addr %s251, 2
        %s253 = smul.addr %s252, 8
        %s254 = scalar_lea.vmem %s5, %s253
        %v255 = vld [vmem:[%s219] sm:$0xff]
        %v256 = vld [vmem:[#allocation4] sm:$0xff]
        %v257 = vld [vmem:[%s2] sm:$0x1]
        %v259 = vlaneseq
        %v260 = vshrl.u32 %v259, 7
        %v261 = vsub.s32 0, %v260
        %v262 = vrot.slane %v257, %v261
        %vm264 = vcmask 64512
        %v266 = vsel %vm264, %v255, 0
        %268 = vmatprep.subr.mxu0 0.0
        %269 = vmatpush1.msra.mxu0 %v256
        %270 = vmatprep.subr.mxu0 0.0
        %271 = vmatpush1.msra.mxu0 0.0
        %272 = vmatprep.subr.mxu0 0.0
        %273 = vmatpush1.msra.mxu0 0.0
        %274 = vmatprep.subr.mxu0 0.0
        %275 = vmatpush1.msra.mxu0 0.0
        %276 = vmatprep.subr.mxu0 0.0
        %277 = vmatpush1.msra.mxu0 0.0
        %278 = vmatprep.subr.mxu0 0.0
        %279 = vmatpush1.msra.mxu0 0.0
        %280 = vmatprep.subr.mxu0 0.0
        %281 = vmatpush1.msra.mxu0 0.0
        %282 = vmatprep.subr.mxu0 0.0
        %283 = vmatpush1.msra.mxu0 0.0
        %284 = vmatprep.subr.mxu0 0.0
        %285 = vmatpush1.msra.mxu0 0.0
        %286 = vmatprep.subr.mxu0 0.0
        %287 = vmatpush1.msra.mxu0 0.0
        %288 = vmatprep.subr.mxu0 0.0
        %289 = vmatpush1.msra.mxu0 0.0
        %290 = vmatprep.subr.mxu0 0.0
        %291 = vmatpush1.msra.mxu0 0.0
        %292 = vmatprep.subr.mxu0 0.0
        %293 = vmatpush1.msra.mxu0 0.0
        %294 = vmatprep.subr.mxu0 0.0
        %295 = vmatpush1.msra.mxu0 0.0
        %296 = vmatprep.subr.mxu0 0.0
        %297 = vmatpush1.msra.mxu0 0.0
        %298 = vmatprep.subr.mxu0 0.0
        %299 = vmatpush1.msra.mxu0 0.0
        %300 = vmatprep.subr.mxu0 0.0
        %301 = vmatpush1.msra.mxu0 0.0
        %302 = vmatprep.subr.mxu0 0.0
        %303 = vmatpush1.msra.mxu0 0.0
        %304 = vmatprep.subr.mxu0 0.0
        %305 = vmatpush1.msra.mxu0 0.0
        %306 = vmatprep.subr.mxu0 0.0
        %307 = vmatpush1.msra.mxu0 0.0
        %308 = vmatprep.subr.mxu0 0.0
        %309 = vmatpush1.msra.mxu0 0.0
        %310 = vmatprep.subr.mxu0 0.0
        %311 = vmatpush1.msra.mxu0 0.0
        %312 = vmatprep.subr.mxu0 0.0
        %313 = vmatpush1.msra.mxu0 0.0
        %314 = vmatprep.subr.mxu0 0.0
        %315 = vmatpush1.msra.mxu0 0.0
        %316 = vmatprep.subr.mxu0 0.0
        %317 = vmatpush1.msra.mxu0 0.0
        %318 = vmatprep.subr.mxu0 0.0
        %319 = vmatpush1.msra.mxu0 0.0
        %320 = vmatprep.subr.mxu0 0.0
        %321 = vmatpush1.msra.mxu0 0.0
        %322 = vmatprep.subr.mxu0 0.0
        %323 = vmatpush1.msra.mxu0 0.0
        %324 = vmatprep.subr.mxu0 0.0
        %325 = vmatpush1.msra.mxu0 0.0
        %326 = vmatprep.subr.mxu0 0.0
        %327 = vmatpush1.msra.mxu0 0.0
        %328 = vmatprep.subr.mxu0 0.0
        %329 = vmatpush1.msra.mxu0 0.0
        %330 = vmatprep.subr.mxu0 0.0
        %331 = vmatpush1.msra.mxu0 0.0
        %332 = vmatprep.mubr.f32.mxu0 0.0
        %333 = vmatmul.mubr.f32.gmra.mrb[0].mxu0 %v266
        %v334 = vpop.f32.mrb[0].mxu0
        %v335 = vadd.f32 %v262, %v334
        %v336 = vpop.f32.mrb[0].mxu0
        %337 = vdwg.mxu0
        %v338 = vtanh.pop %v335
        %v339 = vld [vmem:[%s3] sm:$0xff]
        %v340 = vadd.f32 %v338, %v339
        %v341 = vld [vmem:[%s4] sm:$0x1]
        %vm342 = vcmask 253952
        %343 = vst.msk [vmem:[%s254] sm:$0x1] %vm342, %v341
        %vm344 = vcmask 261120
        %345 = vst.msk [vmem:[%s254 + $0x1] sm:$0xff] %vm344, %v340
        %p346 = scmp.lt.s32.totalorder %s20, 1
        %s347 = scalar_select %p346, %s20, 1
        %s348 = smul.addr %s347, 2
        %s349 = smul.addr %s348, 8
        %s350 = scalar_lea.vmem %s5, %s349
        // Predicated region
        $region49: #{tpu_custom_call.1} parent=39 // pred_check
          %p351 = pneg %p148
        $region50: #{tpu_custom_call.1} parent=39 // pred_check_branch
          %353 = sbr.rel (%p351) target = $region52
        $region51: #{tpu_custom_call.1} parent=39 // pred_region
          _
        $region52: #{tpu_custom_call.1} parent=39 // pred_fallthru
          _
      $region40: #{tpu_custom_call.1} parent=5 // pred_fallthru
        _
      %p354 = scmp.le.s32.totalorder 2, %s15
      // Predicated region
      $region53: #{tpu_custom_call.1} parent=5 // pred_check
        %p355 = pneg %p354
      $region54: #{tpu_custom_call.1} parent=5 // pred_check_branch
        %357 = sbr.rel (%p355) target = $region56
      $region55: #{tpu_custom_call.1} parent=5 // pred_region
        %s358 = ssub.s32 %s15, 2
        // Predicated region
        $region57: #{tpu_custom_call.1} parent=55 // pred_check
          %p359 = pneg %p154
        $region58: #{tpu_custom_call.1} parent=55 // pred_check_branch
          %361 = sbr.rel (%p359) target = $region60
        $region59: #{tpu_custom_call.1} parent=55 // pred_region
          %p362 = scmp.lt.s32.totalorder %s21, 1
          %s363 = scalar_select %p362, %s21, 1
          %s364 = smul.addr %s363, 2
          %s365 = smul.addr %s364, 8
          %s366 = scalar_lea.vmem %s5, %s365
        $region60: #{tpu_custom_call.1} parent=55 // pred_fallthru
          _
      $region56: #{tpu_custom_call.1} parent=5 // pred_fallthru
        _
    $region6: #{tpu_custom_call.1} parent=1 // loop_footer
      %s19 = sadd.s32 1, %s15
    $region7: #{tpu_custom_call.1} parent=1 // loop_footer_branch
      %14 = sbr.rel target = $region3
    $region8: #{tpu_custom_call.1} parent=1 // loop_exit
      _
    %367 = vsyncpa [#allocation3], 1
    %s368 = scalar_lea.sflag [#allocation3], 1
    %369 = vsyncpa %s368, 1
    %370 = vsyncpa [#allocation5], 1

</llo_original>
